<compile_context>
chip_gen: v5e
topology: v5e:2x2
jax: 0.10.0
libtpu: 0.0.40
codegen_flags: <defaults>
</compile_context>

<pallas_src>
import jax
import jax.numpy as jnp
from jax.experimental import pallas as pl
from jax.experimental.pallas import tpu as pltpu


def _round_up(x, m):
    return (x + m - 1) // m * m


def _device_kind():
    try:
        return jax.devices()[0].device_kind.lower()
    except Exception:
        return ""


def prepare_params(w1, b1, w2, b2, w3, *, elementwise_dtype=jnp.float32):
    """One-time parameter prep, hoisted out of the per-call hot path.

    Takes weights in math layout [in, out] (= nn.Linear.weight.T) and biases of
    shape (H,) or (1, H).  Returns bf16 weights in (out, in) layout (what the
    batch-in-lanes kernel consumes -- also nn.Linear's native storage) and
    (H, 1) column biases in the elementwise compute dtype.
    """
    def col(b):
        return jnp.asarray(b, elementwise_dtype).reshape(-1, 1)

    return dict(
        w1=jnp.asarray(w1, jnp.bfloat16).T,   # (H, F)
        w2=jnp.asarray(w2, jnp.bfloat16).T,   # (H, H)
        w3=jnp.asarray(w3, jnp.bfloat16).T,   # (O, H)
        b1=col(b1),                           # (H, 1)
        b2=col(b2),                           # (H, 1)
    )


def line_network_kernel(xt_ref, w1_ref, b1_ref, w2_ref, b2_ref, w3_ref, ot_ref):
    """Fused 3-layer tanh MLP on one batch tile; batch lives in the lane dim.

    xt_ref: (F, tile_b)  input^T (original dtype; cast to bf16 here)
    w*_ref: (out, in)    bf16, VMEM-resident across the grid
    b*_ref: (H, 1)       elementwise dtype; lane-broadcast over the batch
    ot_ref: (O, tile_b)  f32 output^T, lane-dense store
    """
    x = xt_ref[...].astype(jnp.bfloat16)                        # (F, tb)

    # Layer 1: MXU bf16 matmul, f32 accumulation; bias + tanh in the
    # elementwise dtype (bf16 on v6e/v7x, f32 on v5e).
    b1 = b1_ref[...]
    a1 = jnp.dot(w1_ref[...], x, preferred_element_type=jnp.float32)
    h1 = jnp.tanh(a1.astype(b1.dtype) + b1)                     # (H, tb)

    # Layer 2.
    b2 = b2_ref[...]
    a2 = jnp.dot(w2_ref[...], h1.astype(jnp.bfloat16),
                 preferred_element_type=jnp.float32)
    h2 = jnp.tanh(a2.astype(b2.dtype) + b2)                     # (H, tb)

    # Layer 3 (no bias): final tanh in f32, lane-dense f32 store.
    a3 = jnp.dot(w3_ref[...], h2.astype(jnp.bfloat16),
                 preferred_element_type=jnp.float32)
    ot_ref[...] = jnp.tanh(a3).astype(ot_ref.dtype)             # (O, tb)


def line_network(x, params, *, tile_b=None, max_tile_b=2048):
    B, F = x.shape
    w1, b1 = params["w1"], params["b1"]
    w2, b2 = params["w2"], params["b2"]
    w3 = params["w3"]
    H = w1.shape[0]
    O = w3.shape[0]
    assert w1.shape == (H, F) and w2.shape == (H, H) and w3.shape == (O, H)

    kind = _device_kind()

    # Batch is the lane dimension -> pad to a multiple of 128 for dense vregs.
    Bp = _round_up(B, 128)
    if tile_b is None:
        if "v7" in kind and Bp % 256 == 0:
            tile_b = Bp // 2          # even split keeps both v7x TCs busy
        else:
            tile_b = Bp               # v5e/v6e: single core, one big tile
        tile_b = min(tile_b, max_tile_b)
    tile_b = max(128, (min(tile_b, Bp) // 128) * 128)
    Bp = _round_up(Bp, tile_b)

    # Batch into lanes: a single cheap transpose (zero-pad only if needed;
    # padded columns are sliced off and never affect real outputs).
    xt = x.T
    if Bp != B:
        xt = jnp.zeros((F, Bp), x.dtype).at[:, :B].set(xt)

    out_t = pl.pallas_call(
        line_network_kernel,
        out_shape=jax.ShapeDtypeStruct((O, Bp), jnp.float32),
        grid=(Bp // tile_b,),
        in_specs=[
            pl.BlockSpec((F, tile_b), lambda i: (0, i)),  # x^T: tiled over batch lanes
            pl.BlockSpec((H, F), lambda i: (0, 0)),       # W1: VMEM resident
            pl.BlockSpec((H, 1), lambda i: (0, 0)),       # b1
            pl.BlockSpec((H, H), lambda i: (0, 0)),       # W2
            pl.BlockSpec((H, 1), lambda i: (0, 0)),       # b2
            pl.BlockSpec((O, H), lambda i: (0, 0)),       # W3
        ],
        out_specs=pl.BlockSpec((O, tile_b), lambda i: (0, i)),
        compiler_params=pltpu.CompilerParams(
            # Batch tiles are independent; shards across v7x's 2 TensorCores
            # (no-op on single-core v5e/v6e).  Footprint is ~KBs, so no
            # vmem_limit_bytes override is needed.
            dimension_semantics=("parallel",),
        ),
    )(xt, w1, b1, w2, b2, w3)

    out_t = out_t[:, :B] if Bp != B else out_t
    return out_t.T


if __name__ == "__main__":
    # Small shapes consistent with the module's forward pass; batch chosen so
    # the v7x path exercises a 2-tile grid while v5e/v6e use a single tile.
    batch = 512
    feature_dim = 16
    hidden_layer_dim = 32
    output_dim = 8

    key = jax.random.PRNGKey(0)
    kx, k1, kb1, k2, kb2, k3 = jax.random.split(key, 6)

    x = jax.random.normal(kx, (batch, feature_dim), dtype=jnp.float32)
    # Deterministic synthetic parameters in math layout [in, out]
    # (prepare_params transposes them once into the kernel's (out, in) layout).
    w1 = jax.random.normal(k1, (feature_dim, hidden_layer_dim), jnp.float32) * 0.1
    b1 = jax.random.normal(kb1, (hidden_layer_dim,), jnp.float32) * 0.1
    w2 = jax.random.normal(k2, (hidden_layer_dim, hidden_layer_dim), jnp.float32) * 0.1
    b2 = jax.random.normal(kb2, (hidden_layer_dim,), jnp.float32) * 0.1
    w3 = jax.random.normal(k3, (hidden_layer_dim, output_dim), jnp.float32) * 0.1

    # Elementwise (bias + tanh) dtype per generation: bf16 where the VPU/EUP
    # support it natively (v6e/v7x), f32 otherwise (v5e and unknown chips).
    kind = _device_kind()
    elem_dtype = jnp.bfloat16 if ("v6" in kind or "v7" in kind) else jnp.float32

    params = prepare_params(w1, b1, w2, b2, w3, elementwise_dtype=elem_dtype)

    out = line_network(x, params)
    jax.block_until_ready(out)

    # Cross-check against a plain f32 JAX reference of the same forward pass.
    ref = jnp.tanh(jnp.tanh(jnp.tanh(x @ w1 + b1) @ w2 + b2) @ w3)
    assert out.shape == (batch, output_dim)
    # Tolerance accounts for bf16 MXU inputs (f32 accumulation) and optional
    # bf16 elementwise stage on v6e/v7x.
    assert jnp.allclose(out, ref, atol=2e-2, rtol=2e-2), float(
        jnp.max(jnp.abs(out - ref))
    )

    print("KERNEL_OK")
</pallas_src>

<mosaic_0001>
module attributes {stable_mosaic.version = 11 : i64} {
  func.func @line_network_kernel(%arg0: i32, %arg1: memref<16x512xf32, #tpu.memory_space<vmem>>, %arg2: memref<32x16xbf16, #tpu.memory_space<vmem>>, %arg3: memref<32x1xf32, #tpu.memory_space<vmem>>, %arg4: memref<32x32xbf16, #tpu.memory_space<vmem>>, %arg5: memref<32x1xf32, #tpu.memory_space<vmem>>, %arg6: memref<8x32xbf16, #tpu.memory_space<vmem>>, %arg7: memref<8x512xf32, #tpu.memory_space<vmem>>) attributes {dimension_semantics = [#tpu.dimension_semantics<parallel>], iteration_bounds = array<i64: 1>, scalar_prefetch = 0 : i64, scratch_operands = 0 : i64, tpu.core_type = #tpu.core_type<tc>, window_params = [{transform_indices = @transform_0, window_bounds = array<i64: 16, 512>}, {pipeline_mode = #tpu.pipeline_mode<synchronous>, transform_indices = @transform_1, window_bounds = array<i64: 32, 16>}, {pipeline_mode = #tpu.pipeline_mode<synchronous>, transform_indices = @transform_2, window_bounds = array<i64: 32, 1>}, {pipeline_mode = #tpu.pipeline_mode<synchronous>, transform_indices = @transform_3, window_bounds = array<i64: 32, 32>}, {pipeline_mode = #tpu.pipeline_mode<synchronous>, transform_indices = @transform_4, window_bounds = array<i64: 32, 1>}, {pipeline_mode = #tpu.pipeline_mode<synchronous>, transform_indices = @transform_5, window_bounds = array<i64: 8, 32>}, {transform_indices = @transform_6, window_bounds = array<i64: 8, 512>}]} {
    %c0 = arith.constant 0 : index
    %c0_0 = arith.constant 0 : index
    %0 = vector.load %arg1[%c0, %c0_0] : memref<16x512xf32, #tpu.memory_space<vmem>>, vector<16x512xf32>
    %1 = arith.truncf %0 : vector<16x512xf32> to vector<16x512xbf16>
    %c0_1 = arith.constant 0 : index
    %c0_2 = arith.constant 0 : index
    %2 = vector.load %arg3[%c0_1, %c0_2] : memref<32x1xf32, #tpu.memory_space<vmem>>, vector<32x1xf32>
    %c0_3 = arith.constant 0 : index
    %c0_4 = arith.constant 0 : index
    %3 = vector.load %arg2[%c0_3, %c0_4] : memref<32x16xbf16, #tpu.memory_space<vmem>>, vector<32x16xbf16>
    %cst = arith.constant dense<0.000000e+00> : vector<32x512xf32>
    %4 = tpu.matmul %3, %1, %cst {dimension_numbers = #tpu.dot_dimension_numbers<[1], [0], [0], [1], [0, 0, 1, 1], [], []>} : vector<32x16xbf16>, vector<16x512xbf16>, vector<32x512xf32> -> vector<32x512xf32>
    %5 = vector.broadcast %2 : vector<32x1xf32> to vector<32x512xf32>
    %6 = arith.addf %4, %5 : vector<32x512xf32>
    %7 = math.tanh %6 : vector<32x512xf32>
    %c0_5 = arith.constant 0 : index
    %c0_6 = arith.constant 0 : index
    %8 = vector.load %arg5[%c0_5, %c0_6] : memref<32x1xf32, #tpu.memory_space<vmem>>, vector<32x1xf32>
    %c0_7 = arith.constant 0 : index
    %c0_8 = arith.constant 0 : index
    %9 = vector.load %arg4[%c0_7, %c0_8] : memref<32x32xbf16, #tpu.memory_space<vmem>>, vector<32x32xbf16>
    %10 = arith.truncf %7 : vector<32x512xf32> to vector<32x512xbf16>
    %cst_9 = arith.constant dense<0.000000e+00> : vector<32x512xf32>
    %11 = tpu.matmul %9, %10, %cst_9 {dimension_numbers = #tpu.dot_dimension_numbers<[1], [0], [0], [1], [0, 0, 1, 1], [], []>} : vector<32x32xbf16>, vector<32x512xbf16>, vector<32x512xf32> -> vector<32x512xf32>
    %12 = vector.broadcast %8 : vector<32x1xf32> to vector<32x512xf32>
    %13 = arith.addf %11, %12 : vector<32x512xf32>
    %14 = math.tanh %13 : vector<32x512xf32>
    %c0_10 = arith.constant 0 : index
    %c0_11 = arith.constant 0 : index
    %15 = vector.load %arg6[%c0_10, %c0_11] : memref<8x32xbf16, #tpu.memory_space<vmem>>, vector<8x32xbf16>
    %16 = arith.truncf %14 : vector<32x512xf32> to vector<32x512xbf16>
    %cst_12 = arith.constant dense<0.000000e+00> : vector<8x512xf32>
    %17 = tpu.matmul %15, %16, %cst_12 {dimension_numbers = #tpu.dot_dimension_numbers<[1], [0], [0], [1], [0, 0, 1, 1], [], []>} : vector<8x32xbf16>, vector<32x512xbf16>, vector<8x512xf32> -> vector<8x512xf32>
    %18 = math.tanh %17 : vector<8x512xf32>
    %c0_13 = arith.constant 0 : index
    %c0_14 = arith.constant 0 : index
    %19 = vector.load %arg7[%c0_13, %c0_14] : memref<8x512xf32, #tpu.memory_space<vmem>>, vector<8x512xf32>
    tpu.vector_store %arg7[%c0_13, %c0_14], %18 {strides = array<i32>} : memref<8x512xf32, #tpu.memory_space<vmem>>, vector<8x512xf32>,
    return
  }
  func.func @transform_0(%arg0: i32) -> (i32, i32) {
    %c0_i32 = arith.constant 0 : i32
    %c0_i32_0 = arith.constant 0 : i32
    return %c0_i32, %arg0 : i32, i32
  }
  func.func @transform_1(%arg0: i32) -> (i32, i32) {
    %c0_i32 = arith.constant 0 : i32
    %c0_i32_0 = arith.constant 0 : i32
    %c0_i32_1 = arith.constant 0 : i32
    return %c0_i32, %c0_i32_0 : i32, i32
  }
  func.func @transform_2(%arg0: i32) -> (i32, i32) {
    %c0_i32 = arith.constant 0 : i32
    %c0_i32_0 = arith.constant 0 : i32
    %c0_i32_1 = arith.constant 0 : i32
    return %c0_i32, %c0_i32_0 : i32, i32
  }
  func.func @transform_3(%arg0: i32) -> (i32, i32) {
    %c0_i32 = arith.constant 0 : i32
    %c0_i32_0 = arith.constant 0 : i32
    %c0_i32_1 = arith.constant 0 : i32
    return %c0_i32, %c0_i32_0 : i32, i32
  }
  func.func @transform_4(%arg0: i32) -> (i32, i32) {
    %c0_i32 = arith.constant 0 : i32
    %c0_i32_0 = arith.constant 0 : i32
    %c0_i32_1 = arith.constant 0 : i32
    return %c0_i32, %c0_i32_0 : i32, i32
  }
  func.func @transform_5(%arg0: i32) -> (i32, i32) {
    %c0_i32 = arith.constant 0 : i32
    %c0_i32_0 = arith.constant 0 : i32
    %c0_i32_1 = arith.constant 0 : i32
    return %c0_i32, %c0_i32_0 : i32, i32
  }
  func.func @transform_6(%arg0: i32) -> (i32, i32) {
    %c0_i32 = arith.constant 0 : i32
    %c0_i32_0 = arith.constant 0 : i32
    return %c0_i32, %arg0 : i32, i32
  }
}

</mosaic_0001>

<llo_original>
// kernel: tpu_custom_call.1
$region0: #{tpu_custom_call.1}
  #allocation0 [shape = 'u32[]', space=smem, size = 0x4, offset = 0x4, fixed_abs, tag = 'smem constant byte address 0x4 - core index']
  #allocation1 [shape = 'u32[72,128]{1,0:T(1,128)}', space=vmem, size = 0x9000, scoped, tag = 'internal scratch']
  %s0 = inlined_call_operand.vmem [shape: f32[16,512], index: 0, kind: input, shape index: {}]
  %s1 = inlined_call_operand.vmem [shape: bf16[32,16], index: 1, kind: input, shape index: {}]
  %s2 = inlined_call_operand.vmem [shape: f32[32,1], index: 2, kind: input, shape index: {}]
  %s3 = inlined_call_operand.vmem [shape: bf16[32,32], index: 3, kind: input, shape index: {}]
  %s4 = inlined_call_operand.vmem [shape: f32[32,1], index: 4, kind: input, shape index: {}]
  %s5 = inlined_call_operand.vmem [shape: bf16[8,32], index: 5, kind: input, shape index: {}]
  %s6 = inlined_call_operand.hbm [shape: f32[8,512], index: 6, kind: output, shape index: {}]
  %s7 = sld [smem:[#allocation0]]
  $region34: #{tpu_custom_call.1} parent=0
    _
  %s9 = ssub.s32 1, %s7
  %s10 = scalar_select 0, %s9, %s7
  $region1: #{tpu_custom_call.1} parent=0
    #allocation2 [shape = 'u8[16384]{0}', space=vmem, size = 0x4000, scoped, tag = 'output window, operand 0, single buffered']
    #allocation3 [shape = 's32[1]{0}', space=sflag, size = 0x4, scoped, tag = 'scoped memory for tpu_custom_call.1']
    %11 = vsyncpa [#allocation3], 0
    // Predicated region
    $region2: #{tpu_custom_call.1} parent=1 // pred_check
      _
    $region3: #{tpu_custom_call.1} parent=1 // pred_check_branch
      %13 = sbr.rel (0) target = $region5
    $region4: #{tpu_custom_call.1} parent=1 // pred_region
      _
    $region5: #{tpu_custom_call.1} parent=1 // pred_fallthru
      _
    // Predicated region
    $region6: #{tpu_custom_call.1} parent=1 // pred_check
      _
    $region7: #{tpu_custom_call.1} parent=1 // pred_check_branch
      %15 = sbr.rel (0) target = $region9
    $region8: #{tpu_custom_call.1} parent=1 // pred_region
      _
    $region9: #{tpu_custom_call.1} parent=1 // pred_fallthru
      _
    // Predicated region
    $region10: #{tpu_custom_call.1} parent=1 // pred_check
      _
    $region11: #{tpu_custom_call.1} parent=1 // pred_check_branch
      %17 = sbr.rel (0) target = $region13
    $region12: #{tpu_custom_call.1} parent=1 // pred_region
      _
    $region13: #{tpu_custom_call.1} parent=1 // pred_fallthru
      _
    // Predicated region
    $region14: #{tpu_custom_call.1} parent=1 // pred_check
      _
    $region15: #{tpu_custom_call.1} parent=1 // pred_check_branch
      %19 = sbr.rel (0) target = $region17
    $region16: #{tpu_custom_call.1} parent=1 // pred_region
      _
    $region17: #{tpu_custom_call.1} parent=1 // pred_fallthru
      _
    // Predicated region
    $region18: #{tpu_custom_call.1} parent=1 // pred_check
      _
    $region19: #{tpu_custom_call.1} parent=1 // pred_check_branch
      %21 = sbr.rel (0) target = $region21
    $region20: #{tpu_custom_call.1} parent=1 // pred_region
      _
    $region21: #{tpu_custom_call.1} parent=1 // pred_fallthru
      _
    // Predicated region
    $region22: #{tpu_custom_call.1} parent=1 // pred_check
      _
    $region23: #{tpu_custom_call.1} parent=1 // pred_check_branch
      %23 = sbr.rel (0) target = $region25
    $region24: #{tpu_custom_call.1} parent=1 // pred_region
      _
    $region25: #{tpu_custom_call.1} parent=1 // pred_fallthru
      _
    %v25 = vld [vmem:[%s0] sm:$0xff]
    %v26 = vld [vmem:[%s0 + $0x8] sm:$0xff]
    %v27 = vld [vmem:[%s0 + $0x10] sm:$0xff]
    %v28 = vld [vmem:[%s0 + $0x18] sm:$0xff]
    %v29 = vld [vmem:[%s0 + $0x20] sm:$0xff]
    %v30 = vld [vmem:[%s0 + $0x28] sm:$0xff]
    %v31 = vld [vmem:[%s0 + $0x30] sm:$0xff]
    %v32 = vld [vmem:[%s0 + $0x38] sm:$0xff]
    %v33 = vpack.c.bf16 %v29, %v25
    %v34 = vpack.c.bf16 %v30, %v26
    %v35 = vpack.c.bf16 %v31, %v27
    %v36 = vpack.c.bf16 %v32, %v28
    %v37 = vld [vmem:[%s2] sm:$0xff]
    %v38 = vld [vmem:[%s2 + $0x8] sm:$0xff]
    %v39 = vld [vmem:[%s2 + $0x10] sm:$0xff]
    %v40 = vld [vmem:[%s2 + $0x18] sm:$0xff]
    %v41 = vld [vmem:[%s1] sm:$0xf]
    %v42 = vld [vmem:[%s1 + $0x4] sm:$0xf]
    %v43 = vld [vmem:[%s1 + $0x8] sm:$0xf]
    %v44 = vld [vmem:[%s1 + $0xc] sm:$0xf]
    %46 = vset.pattern.permute.xlu0 0
    %47 = vperm.xlu0 %46, %v37
    %v48 = vpop.permute.xlu0 %47
    %51 = vset.pattern.permute.xlu0 0
    %52 = vperm.xlu0 %51, %v38
    %v53 = vpop.permute.xlu0 %52
    %56 = vset.pattern.permute.xlu0 0
    %57 = vperm.xlu0 %56, %v39
    %v58 = vpop.permute.xlu0 %57
    %61 = vset.pattern.permute.xlu0 0
    %62 = vperm.xlu0 %61, %v40
    %v63 = vpop.permute.xlu0 %62
    %v69 = vunpack.c.l.b16 %v41
    %v70 = vunpack.c.l.b16 %v42
    %v71 = vunpack.c.l.b16 %v43
    %v72 = vunpack.c.l.b16 %v44
    %v73 = vpack.c.b16 %v70, %v69
    %v74 = vpack.c.b16 %v72, %v71
    %vm75 = vcmask 130048
    %v77 = vsel %vm75, %v73, 0
    %v80 = vsel %vm75, %v74, 0
    %82 = vmatpush.bf16.msra.mxu0 0
    %83 = vmatpush.bf16.msra.mxu0 0
    %84 = vmatpush.bf16.msra.mxu0 0
    %85 = vmatpush.bf16.msra.mxu0 0
    %86 = vmatpush.bf16.msra.mxu0 0
    %87 = vmatpush.bf16.msra.mxu0 0
    %88 = vmatpush.bf16.msra.mxu0 0
    %89 = vmatpush.bf16.msra.mxu0 %v33
    %90 = vmatmul.bf16.gmra.mxu0 %v77
    %v91 = vpop.f32.mrf.mxu0
    %v92 = vadd.f32 %v48, %v91
    %v93 = vpop.f32.mrf.mxu0
    %v94 = vadd.f32 %v53, %v93
    %95 = vmatmul.bf16.gmra.mxu0 %v80
    %v96 = vpop.f32.mrf.mxu0
    %v97 = vadd.f32 %v58, %v96
    %v98 = vpop.f32.mrf.mxu0
    %v99 = vadd.f32 %v63, %v98
    %100 = vdwg.mxu0
    %101 = vmatpush.bf16.msra.mxu0 0
    %102 = vmatpush.bf16.msra.mxu0 0
    %103 = vmatpush.bf16.msra.mxu0 0
    %104 = vmatpush.bf16.msra.mxu0 0
    %105 = vmatpush.bf16.msra.mxu0 0
    %106 = vmatpush.bf16.msra.mxu0 0
    %107 = vmatpush.bf16.msra.mxu0 0
    %108 = vmatpush.bf16.msra.mxu0 %v34
    %109 = vmatmul.bf16.gmra.mxu0 %v77
    %v110 = vpop.f32.mrf.mxu0
    %v111 = vadd.f32 %v48, %v110
    %v112 = vpop.f32.mrf.mxu0
    %v113 = vadd.f32 %v53, %v112
    %114 = vmatmul.bf16.gmra.mxu0 %v80
    %v115 = vpop.f32.mrf.mxu0
    %v116 = vadd.f32 %v58, %v115
    %v117 = vpop.f32.mrf.mxu0
    %v118 = vadd.f32 %v63, %v117
    %119 = vdwg.mxu0
    %120 = vmatpush.bf16.msra.mxu0 0
    %121 = vmatpush.bf16.msra.mxu0 0
    %122 = vmatpush.bf16.msra.mxu0 0
    %123 = vmatpush.bf16.msra.mxu0 0
    %124 = vmatpush.bf16.msra.mxu0 0
    %125 = vmatpush.bf16.msra.mxu0 0
    %126 = vmatpush.bf16.msra.mxu0 0
    %127 = vmatpush.bf16.msra.mxu0 %v35
    %128 = vmatmul.bf16.gmra.mxu0 %v77
    %v129 = vpop.f32.mrf.mxu0
    %v130 = vadd.f32 %v48, %v129
    %v131 = vpop.f32.mrf.mxu0
    %v132 = vadd.f32 %v53, %v131
    %133 = vmatmul.bf16.gmra.mxu0 %v80
    %v134 = vpop.f32.mrf.mxu0
    %v135 = vadd.f32 %v58, %v134
    %v136 = vpop.f32.mrf.mxu0
    %v137 = vadd.f32 %v63, %v136
    %138 = vdwg.mxu0
    %139 = vmatpush.bf16.msra.mxu0 0
    %140 = vmatpush.bf16.msra.mxu0 0
    %141 = vmatpush.bf16.msra.mxu0 0
    %142 = vmatpush.bf16.msra.mxu0 0
    %143 = vmatpush.bf16.msra.mxu0 0
    %144 = vmatpush.bf16.msra.mxu0 0
    %145 = vmatpush.bf16.msra.mxu0 0
    %146 = vmatpush.bf16.msra.mxu0 %v36
    %147 = vmatmul.bf16.gmra.mxu0 %v77
    %v148 = vpop.f32.mrf.mxu0
    %v149 = vadd.f32 %v48, %v148
    %v150 = vpop.f32.mrf.mxu0
    %v151 = vadd.f32 %v53, %v150
    %152 = vmatmul.bf16.gmra.mxu0 %v80
    %v153 = vpop.f32.mrf.mxu0
    %v154 = vadd.f32 %v58, %v153
    %v155 = vpop.f32.mrf.mxu0
    %v156 = vadd.f32 %v63, %v155
    %157 = vdwg.mxu0
    %v158 = vtanh.pop %v92
    %v159 = vtanh.pop %v111
    %v160 = vtanh.pop %v130
    %v161 = vtanh.pop %v149
    %v162 = vtanh.pop %v94
    %v163 = vtanh.pop %v113
    %v164 = vtanh.pop %v132
    %v165 = vtanh.pop %v151
    %v166 = vtanh.pop %v97
    %v167 = vtanh.pop %v116
    %v168 = vtanh.pop %v135
    %v169 = vtanh.pop %v154
    %v170 = vtanh.pop %v99
    %v171 = vtanh.pop %v118
    %v172 = vtanh.pop %v137
    %v173 = vtanh.pop %v156
    %v174 = vld [vmem:[%s4] sm:$0xff]
    %v175 = vld [vmem:[%s4 + $0x8] sm:$0xff]
    %v176 = vld [vmem:[%s4 + $0x10] sm:$0xff]
    %v177 = vld [vmem:[%s4 + $0x18] sm:$0xff]
    %v178 = vld [vmem:[%s3] sm:$0xf]
    %v179 = vld [vmem:[%s3 + $0x4] sm:$0xf]
    %v180 = vld [vmem:[%s3 + $0x8] sm:$0xf]
    %v181 = vld [vmem:[%s3 + $0xc] sm:$0xf]
    %v182 = vpack.c.bf16 %v162, %v158
    %v183 = vpack.c.bf16 %v163, %v159
    %v184 = vpack.c.bf16 %v164, %v160
    %v185 = vpack.c.bf16 %v165, %v161
    %v186 = vpack.c.bf16 %v170, %v166
    %v187 = vpack.c.bf16 %v171, %v167
    %v188 = vpack.c.bf16 %v172, %v168
    %v189 = vpack.c.bf16 %v173, %v169
    %191 = vset.pattern.permute.xlu0 0
    %192 = vperm.xlu0 %191, %v174
    %v193 = vpop.permute.xlu0 %192
    %196 = vset.pattern.permute.xlu0 0
    %197 = vperm.xlu0 %196, %v175
    %v198 = vpop.permute.xlu0 %197
    %201 = vset.pattern.permute.xlu0 0
    %202 = vperm.xlu0 %201, %v176
    %v203 = vpop.permute.xlu0 %202
    %206 = vset.pattern.permute.xlu0 0
    %207 = vperm.xlu0 %206, %v177
    %v208 = vpop.permute.xlu0 %207
    %v214 = vunpack.c.l.b16 %v178
    %v215 = vunpack.c.l.b16 %v179
    %v216 = vunpack.c.l.b16 %v180
    %v217 = vunpack.c.l.b16 %v181
    %v218 = vpack.c.b16 %v215, %v214
    %v219 = vpack.c.b16 %v217, %v216
    %vm220 = vcmask 261120
    %v222 = vsel %vm220, %v218, 0
    %v225 = vsel %vm220, %v219, 0
    %227 = vmatpush.bf16.msra.mxu0 0
    %228 = vmatpush.bf16.msra.mxu0 0
    %229 = vmatpush.bf16.msra.mxu0 0
    %230 = vmatpush.bf16.msra.mxu0 0
    %231 = vmatpush.bf16.msra.mxu0 0
    %232 = vmatpush.bf16.msra.mxu0 0
    %233 = vmatpush.bf16.msra.mxu0 %v186
    %234 = vmatpush.bf16.msra.mxu0 %v182
    %235 = vmatmul.bf16.gmra.mxu0 %v222
    %v236 = vpop.f32.mrf.mxu0
    %v237 = vadd.f32 %v193, %v236
    %v238 = vpop.f32.mrf.mxu0
    %v239 = vadd.f32 %v198, %v238
    %240 = vmatmul.bf16.gmra.mxu0 %v225
    %v241 = vpop.f32.mrf.mxu0
    %v242 = vadd.f32 %v203, %v241
    %v243 = vpop.f32.mrf.mxu0
    %v244 = vadd.f32 %v208, %v243
    %245 = vdwg.mxu0
    %246 = vmatpush.bf16.msra.mxu0 0
    %247 = vmatpush.bf16.msra.mxu0 0
    %248 = vmatpush.bf16.msra.mxu0 0
    %249 = vmatpush.bf16.msra.mxu0 0
    %250 = vmatpush.bf16.msra.mxu0 0
    %251 = vmatpush.bf16.msra.mxu0 0
    %252 = vmatpush.bf16.msra.mxu0 %v187
    %253 = vmatpush.bf16.msra.mxu0 %v183
    %254 = vmatmul.bf16.gmra.mxu0 %v222
    %v255 = vpop.f32.mrf.mxu0
    %v256 = vadd.f32 %v193, %v255
    %v257 = vpop.f32.mrf.mxu0
    %v258 = vadd.f32 %v198, %v257
    %259 = vmatmul.bf16.gmra.mxu0 %v225
    %v260 = vpop.f32.mrf.mxu0
    %v261 = vadd.f32 %v203, %v260
    %v262 = vpop.f32.mrf.mxu0
    %v263 = vadd.f32 %v208, %v262
    %264 = vdwg.mxu0
    %265 = vmatpush.bf16.msra.mxu0 0
    %266 = vmatpush.bf16.msra.mxu0 0
    %267 = vmatpush.bf16.msra.mxu0 0
    %268 = vmatpush.bf16.msra.mxu0 0
    %269 = vmatpush.bf16.msra.mxu0 0
    %270 = vmatpush.bf16.msra.mxu0 0
    %271 = vmatpush.bf16.msra.mxu0 %v188
    %272 = vmatpush.bf16.msra.mxu0 %v184
    %273 = vmatmul.bf16.gmra.mxu0 %v222
    %v274 = vpop.f32.mrf.mxu0
    %v275 = vadd.f32 %v193, %v274
    %v276 = vpop.f32.mrf.mxu0
    %v277 = vadd.f32 %v198, %v276
    %278 = vmatmul.bf16.gmra.mxu0 %v225
    %v279 = vpop.f32.mrf.mxu0
    %v280 = vadd.f32 %v203, %v279
    %v281 = vpop.f32.mrf.mxu0
    %v282 = vadd.f32 %v208, %v281
    %283 = vdwg.mxu0
    %284 = vmatpush.bf16.msra.mxu0 0
    %285 = vmatpush.bf16.msra.mxu0 0
    %286 = vmatpush.bf16.msra.mxu0 0
    %287 = vmatpush.bf16.msra.mxu0 0
    %288 = vmatpush.bf16.msra.mxu0 0
    %289 = vmatpush.bf16.msra.mxu0 0
    %290 = vmatpush.bf16.msra.mxu0 %v189
    %291 = vmatpush.bf16.msra.mxu0 %v185
    %292 = vmatmul.bf16.gmra.mxu0 %v222
    %v293 = vpop.f32.mrf.mxu0
    %v294 = vadd.f32 %v193, %v293
    %v295 = vpop.f32.mrf.mxu0
    %v296 = vadd.f32 %v198, %v295
    %297 = vmatmul.bf16.gmra.mxu0 %v225
    %v298 = vpop.f32.mrf.mxu0
    %v299 = vadd.f32 %v203, %v298
    %v300 = vpop.f32.mrf.mxu0
    %v301 = vadd.f32 %v208, %v300
    %302 = vdwg.mxu0
    %v303 = vtanh.pop %v237
    %v304 = vtanh.pop %v256
    %v305 = vtanh.pop %v275
    %v306 = vtanh.pop %v294
    %v307 = vtanh.pop %v239
    %v308 = vtanh.pop %v258
    %v309 = vtanh.pop %v277
    %v310 = vtanh.pop %v296
    %v311 = vtanh.pop %v242
    %v312 = vtanh.pop %v261
    %v313 = vtanh.pop %v280
    %v314 = vtanh.pop %v299
    %v315 = vtanh.pop %v244
    %v316 = vtanh.pop %v263
    %v317 = vtanh.pop %v282
    %v318 = vtanh.pop %v301
    %v319 = vld [vmem:[%s5] sm:$0xf]
    %v320 = vpack.c.bf16 %v307, %v303
    %v321 = vpack.c.bf16 %v308, %v304
    %v322 = vpack.c.bf16 %v309, %v305
    %v323 = vpack.c.bf16 %v310, %v306
    %v324 = vpack.c.bf16 %v315, %v311
    %v325 = vpack.c.bf16 %v316, %v312
    %v326 = vpack.c.bf16 %v317, %v313
    %v327 = vpack.c.bf16 %v318, %v314
    %v329 = vsel %vm220, %v319, 0
    %331 = vmatpush.bf16.msra.mxu0 0
    %332 = vmatpush.bf16.msra.mxu0 0
    %333 = vmatpush.bf16.msra.mxu0 0
    %334 = vmatpush.bf16.msra.mxu0 0
    %335 = vmatpush.bf16.msra.mxu0 0
    %336 = vmatpush.bf16.msra.mxu0 0
    %337 = vmatpush.bf16.msra.mxu0 %v324
    %338 = vmatpush.bf16.msra.mxu0 %v320
    %339 = vmatmul.bf16.gmra.mxu0 %v329
    %v340 = vpop.f32.mrf.mxu0
    %v341 = vadd.f32 0.0, %v340
    %v342 = vpop.f32.mrf.mxu0
    %343 = vdwg.mxu0
    %344 = vmatpush.bf16.msra.mxu0 0
    %345 = vmatpush.bf16.msra.mxu0 0
    %346 = vmatpush.bf16.msra.mxu0 0
    %347 = vmatpush.bf16.msra.mxu0 0
    %348 = vmatpush.bf16.msra.mxu0 0
    %349 = vmatpush.bf16.msra.mxu0 0
    %350 = vmatpush.bf16.msra.mxu0 %v325
    %351 = vmatpush.bf16.msra.mxu0 %v321
    %352 = vmatmul.bf16.gmra.mxu0 %v329
    %v353 = vpop.f32.mrf.mxu0
    %v354 = vadd.f32 0.0, %v353
    %v355 = vpop.f32.mrf.mxu0
    %356 = vdwg.mxu0
    %357 = vmatpush.bf16.msra.mxu0 0
    %358 = vmatpush.bf16.msra.mxu0 0
    %359 = vmatpush.bf16.msra.mxu0 0
    %360 = vmatpush.bf16.msra.mxu0 0
    %361 = vmatpush.bf16.msra.mxu0 0
    %362 = vmatpush.bf16.msra.mxu0 0
    %363 = vmatpush.bf16.msra.mxu0 %v326
    %364 = vmatpush.bf16.msra.mxu0 %v322
    %365 = vmatmul.bf16.gmra.mxu0 %v329
    %v366 = vpop.f32.mrf.mxu0
    %v367 = vadd.f32 0.0, %v366
    %v368 = vpop.f32.mrf.mxu0
    %369 = vdwg.mxu0
    %370 = vmatpush.bf16.msra.mxu0 0
    %371 = vmatpush.bf16.msra.mxu0 0
    %372 = vmatpush.bf16.msra.mxu0 0
    %373 = vmatpush.bf16.msra.mxu0 0
    %374 = vmatpush.bf16.msra.mxu0 0
    %375 = vmatpush.bf16.msra.mxu0 0
    %376 = vmatpush.bf16.msra.mxu0 %v327
    %377 = vmatpush.bf16.msra.mxu0 %v323
    %378 = vmatmul.bf16.gmra.mxu0 %v329
    %v379 = vpop.f32.mrf.mxu0
    %v380 = vadd.f32 0.0, %v379
    %v381 = vpop.f32.mrf.mxu0
    %382 = vdwg.mxu0
    %v383 = vtanh.pop %v341
    %v384 = vtanh.pop %v354
    %v385 = vtanh.pop %v367
    %v386 = vtanh.pop %v380
    %387 = vst [vmem:[#allocation2] sm:$0xff] %v383
    %388 = vst [vmem:[#allocation2 + $0x8] sm:$0xff] %v384
    %389 = vst [vmem:[#allocation2 + $0x10] sm:$0xff] %v385
    %390 = vst [vmem:[#allocation2 + $0x18] sm:$0xff] %v386
    // Predicated region
    $region26: #{tpu_custom_call.1} parent=1 // pred_check
      _
    $region27: #{tpu_custom_call.1} parent=1 // pred_check_branch
      %392 = sbr.rel (0) target = $region29
    $region28: #{tpu_custom_call.1} parent=1 // pred_region
      %394 = vsyncadd [#allocation3], 0
      %s396 = sshll.u32 [#allocation2], 4
      %s397 = int_to_ptr.vmem [resolvable:$true] %s396
      %s398 = sshll.u32 %s6, 4
      %s399 = int_to_ptr.hbm [resolvable:$true] %s398
      %401 = dma.vmem_to_hbm [thread:$0]  %s397, 512, %s399, [#allocation3]
    $region29: #{tpu_custom_call.1} parent=1 // pred_fallthru
      _
    // Predicated region
    $region30: #{tpu_custom_call.1} parent=1 // pred_check
      _
    $region31: #{tpu_custom_call.1} parent=1 // pred_check_branch
      %403 = sbr.rel (0) target = $region33
    $region32: #{tpu_custom_call.1} parent=1 // pred_region
      %405 = dma.done [#allocation3], 512
    $region33: #{tpu_custom_call.1} parent=1 // pred_fallthru
      _
    %406 = vsyncpa [#allocation3], 1

</llo_original>
